<compile_context>
chip_gen: v7x
topology: tpu7x:2x2x1
jax: 0.10.0
libtpu: 0.0.40
codegen_flags: <defaults>
</compile_context>

<pallas_src>
import jax
import jax.numpy as jnp
from jax.experimental import pallas as pl
from jax.experimental.pallas import tpu as pltpu


def lstm_fc_kernel(x_ref, wih_ref, whh_ref, b_ref, wfc_ref, bfc_ref, out_ref):
    """LSTM over time + final Linear on the last hidden state.

    x_ref   : (T, B, 1)  f32   time-major input (input_size == 1)
    wih_ref : (1, 4H)    f32   W_ih transposed
    whh_ref : (H, 4H)    f32   W_hh transposed
    b_ref   : (1, 4H)    f32   b_ih + b_hh
    wfc_ref : (1, H)     f32   fc weight as a row
    bfc_ref : (1, 1)     f32
    out_ref : (B, 1)     f32
    Gate order along the 4H axis matches PyTorch: [i, f, g, o].
    """
    T, B, _ = x_ref.shape
    H = whh_ref.shape[0]

    # ---------- hoisted out of the recurrence (runs once) ----------
    # Input projection + bias for ALL timesteps. I == 1, so this is a pure
    # broadcast multiply (VPU), no MXU traffic on the serial critical path.
    wih = wih_ref[...]                                    # (1, 4H)
    bias = b_ref[...]                                     # (1, 4H)
    x_all = x_ref[...]                                    # (T, B, 1)
    x_proj = x_all * wih[None, :, :] + bias[None, :, :]   # (T, B, 4H) f32

    # Recurrent weight as bf16 (single-pass MXU); accumulation stays f32.
    whh_bf = whh_ref[...].astype(jnp.bfloat16)            # (H, 4H)

    h = jnp.zeros((B, H), jnp.float32)
    c = jnp.zeros((B, H), jnp.float32)

    # ---------- fully unrolled recurrence (T is small and static) ----------
    for t in range(T):
        gates = x_proj[t] + jnp.dot(h.astype(jnp.bfloat16), whh_bf,
                                    preferred_element_type=jnp.float32)   # (B, 4H)
        # Transcendentals over the whole 4H = 128-lane vreg (EUP slot), slice after.
        sig = jax.nn.sigmoid(gates)
        tnh = jnp.tanh(gates)
        i_g = sig[:, 0 * H:1 * H]
        f_g = sig[:, 1 * H:2 * H]
        g_g = tnh[:, 2 * H:3 * H]
        o_g = sig[:, 3 * H:4 * H]
        c = f_g * c + i_g * g_g
        h = o_g * jnp.tanh(c)

    # ---------- final Linear(H, 1): VPU multiply + lane reduce (skip the MXU) ----------
    out_ref[...] = jnp.sum(h * wfc_ref[...], axis=-1, keepdims=True) + bfc_ref[...]


def lstm_model_forward(x, params):
    """x: (B, T, I) batch_first, like the PyTorch module. Returns (B, 1)."""
    B, T, I = x.shape
    x_tm = jnp.transpose(x, (1, 0, 2)).astype(jnp.float32)   # (T, B, I) time-major

    vmem = pl.BlockSpec(memory_space=pltpu.MemorySpace.VMEM)
    out = pl.pallas_call(
        lstm_fc_kernel,
        out_shape=jax.ShapeDtypeStruct((B, 1), jnp.float32),
        in_specs=[vmem] * 6,
        out_specs=vmem,
    )(x_tm, params["w_ih_t"], params["w_hh_t"], params["b"],
      params["w_fc_row"], params["b_fc"])
    return out


def init_params(key, input_size=1, hidden_size=32):
    """Deterministic init mimicking PyTorch's uniform(-1/sqrt(H), 1/sqrt(H))."""
    H, I = hidden_size, input_size
    k_lstm = 1.0 / jnp.sqrt(jnp.float32(H))
    k_fc = 1.0 / jnp.sqrt(jnp.float32(H))
    ks = jax.random.split(key, 6)
    w_ih = jax.random.uniform(ks[0], (4 * H, I), jnp.float32, -k_lstm, k_lstm)
    w_hh = jax.random.uniform(ks[1], (4 * H, H), jnp.float32, -k_lstm, k_lstm)
    b_ih = jax.random.uniform(ks[2], (4 * H,), jnp.float32, -k_lstm, k_lstm)
    b_hh = jax.random.uniform(ks[3], (4 * H,), jnp.float32, -k_lstm, k_lstm)
    w_fc = jax.random.uniform(ks[4], (1, H), jnp.float32, -k_fc, k_fc)
    b_fc = jax.random.uniform(ks[5], (1,), jnp.float32, -k_fc, k_fc)
    return {
        "w_ih_t": w_ih.T,                         # (I, 4H)
        "w_hh_t": w_hh.T,                         # (H, 4H)
        "b": (b_ih + b_hh).reshape(1, 4 * H),     # (1, 4H)
        "w_fc_row": w_fc,                         # (1, H)
        "b_fc": b_fc.reshape(1, 1),               # (1, 1)
    }


def reference_forward(x, params):
    """Pure-JAX f32 reference with PyTorch LSTM semantics (for correctness check)."""
    B, T, I = x.shape
    H = params["w_hh_t"].shape[0]
    h = jnp.zeros((B, H), jnp.float32)
    c = jnp.zeros((B, H), jnp.float32)
    x = x.astype(jnp.float32)
    for t in range(T):
        gates = x[:, t, :] @ params["w_ih_t"] + h @ params["w_hh_t"] + params["b"]
        i_g = jax.nn.sigmoid(gates[:, 0 * H:1 * H])
        f_g = jax.nn.sigmoid(gates[:, 1 * H:2 * H])
        g_g = jnp.tanh(gates[:, 2 * H:3 * H])
        o_g = jax.nn.sigmoid(gates[:, 3 * H:4 * H])
        c = f_g * c + i_g * g_g
        h = o_g * jnp.tanh(c)
    return h @ params["w_fc_row"].T + params["b_fc"]


if __name__ == "__main__":
    B, T, I, H = 2, 8, 1, 32
    key = jax.random.PRNGKey(0)
    k_x, k_p = jax.random.split(key)
    x = jax.random.normal(k_x, (B, T, I), jnp.float32)
    params = init_params(k_p, input_size=I, hidden_size=H)

    out = lstm_model_forward(x, params)
    out = jax.block_until_ready(out)

    ref = reference_forward(x, params)
    assert out.shape == (B, 1)
    # Kernel uses a bf16 recurrent matmul (f32 accumulation); rounding compounds over T,
    # so compare against the pure-f32 reference with a correspondingly loose tolerance.
    assert jnp.allclose(out, ref, atol=2e-2, rtol=2e-2), (out, ref)

    print("KERNEL_OK")
</pallas_src>

<mosaic_0001>
module attributes {stable_mosaic.version = 11 : i64} {
  func.func @lstm_fc_kernel(%arg0: memref<8x2x1xf32, #tpu.memory_space<vmem>>, %arg1: memref<1x128xf32, #tpu.memory_space<vmem>>, %arg2: memref<32x128xf32, #tpu.memory_space<vmem>>, %arg3: memref<1x128xf32, #tpu.memory_space<vmem>>, %arg4: memref<1x32xf32, #tpu.memory_space<vmem>>, %arg5: memref<1x1xf32, #tpu.memory_space<vmem>>, %arg6: memref<2x1xf32, #tpu.memory_space<vmem>>) attributes {dimension_semantics = [], scalar_prefetch = 0 : i64, scratch_operands = 0 : i64, tpu.core_type = #tpu.core_type<tc>} {
    %c0 = arith.constant 0 : index
    %c0_0 = arith.constant 0 : index
    %0 = vector.load %arg1[%c0, %c0_0] : memref<1x128xf32, #tpu.memory_space<vmem>>, vector<1x128xf32>
    %c0_1 = arith.constant 0 : index
    %c0_2 = arith.constant 0 : index
    %1 = vector.load %arg3[%c0_1, %c0_2] : memref<1x128xf32, #tpu.memory_space<vmem>>, vector<1x128xf32>
    %c0_3 = arith.constant 0 : index
    %c0_4 = arith.constant 0 : index
    %c0_5 = arith.constant 0 : index
    %2 = vector.load %arg0[%c0_3, %c0_4, %c0_5] : memref<8x2x1xf32, #tpu.memory_space<vmem>>, vector<8x2x1xf32>
    %3 = vector.shape_cast %0 : vector<1x128xf32> to vector<1x1x128xf32>
    %4 = vector.broadcast %2 : vector<8x2x1xf32> to vector<8x2x128xf32>
    %5 = vector.broadcast %3 : vector<1x1x128xf32> to vector<8x2x128xf32>
    %6 = arith.mulf %4, %5 : vector<8x2x128xf32>
    %7 = vector.shape_cast %1 : vector<1x128xf32> to vector<1x1x128xf32>
    %8 = vector.broadcast %7 : vector<1x1x128xf32> to vector<8x2x128xf32>
    %9 = arith.addf %6, %8 : vector<8x2x128xf32>
    %c0_6 = arith.constant 0 : index
    %c0_7 = arith.constant 0 : index
    %10 = vector.load %arg2[%c0_6, %c0_7] : memref<32x128xf32, #tpu.memory_space<vmem>>, vector<32x128xf32>
    %11 = arith.truncf %10 : vector<32x128xf32> to vector<32x128xbf16>
    %cst = arith.constant 0.000000e+00 : f32
    %12 = vector.broadcast %cst : f32 to vector<2x32xf32>
    %cst_8 = arith.constant 0.000000e+00 : f32
    %13 = vector.broadcast %cst_8 : f32 to vector<2x32xf32>
    %14 = vector.extract_strided_slice %9 {offsets = [0, 0, 0], sizes = [1, 2, 128], strides = [1, 1, 1]} : vector<8x2x128xf32> to vector<1x2x128xf32>
    %15 = vector.shape_cast %14 : vector<1x2x128xf32> to vector<2x128xf32>
    %16 = arith.truncf %12 : vector<2x32xf32> to vector<2x32xbf16>
    %cst_9 = arith.constant dense<0.000000e+00> : vector<2x128xf32>
    %17 = tpu.matmul %16, %11, %cst_9 {dimension_numbers = #tpu.dot_dimension_numbers<[1], [0], [0], [1], [0, 0, 1, 1], [], []>} : vector<2x32xbf16>, vector<32x128xbf16>, vector<2x128xf32> -> vector<2x128xf32>
    %18 = arith.addf %15, %17 : vector<2x128xf32>
    %19 = arith.negf %18 : vector<2x128xf32>
    %20 = math.exp %19 : vector<2x128xf32>
    %cst_10 = arith.constant 1.000000e+00 : f32
    %21 = vector.broadcast %cst_10 : f32 to vector<2x128xf32>
    %22 = arith.addf %21, %20 : vector<2x128xf32>
    %23 = arith.divf %21, %22 : vector<2x128xf32>
    %24 = math.tanh %18 : vector<2x128xf32>
    %25 = vector.extract_strided_slice %23 {offsets = [0, 0], sizes = [2, 32], strides = [1, 1]} : vector<2x128xf32> to vector<2x32xf32>
    %26 = vector.extract_strided_slice %23 {offsets = [0, 32], sizes = [2, 32], strides = [1, 1]} : vector<2x128xf32> to vector<2x32xf32>
    %27 = vector.extract_strided_slice %24 {offsets = [0, 64], sizes = [2, 32], strides = [1, 1]} : vector<2x128xf32> to vector<2x32xf32>
    %28 = vector.extract_strided_slice %23 {offsets = [0, 96], sizes = [2, 32], strides = [1, 1]} : vector<2x128xf32> to vector<2x32xf32>
    %29 = arith.mulf %26, %13 : vector<2x32xf32>
    %30 = arith.mulf %25, %27 : vector<2x32xf32>
    %31 = arith.addf %29, %30 : vector<2x32xf32>
    %32 = math.tanh %31 : vector<2x32xf32>
    %33 = arith.mulf %28, %32 : vector<2x32xf32>
    %34 = vector.extract_strided_slice %9 {offsets = [1, 0, 0], sizes = [1, 2, 128], strides = [1, 1, 1]} : vector<8x2x128xf32> to vector<1x2x128xf32>
    %35 = vector.shape_cast %34 : vector<1x2x128xf32> to vector<2x128xf32>
    %36 = arith.truncf %33 : vector<2x32xf32> to vector<2x32xbf16>
    %cst_11 = arith.constant dense<0.000000e+00> : vector<2x128xf32>
    %37 = tpu.matmul %36, %11, %cst_11 {dimension_numbers = #tpu.dot_dimension_numbers<[1], [0], [0], [1], [0, 0, 1, 1], [], []>} : vector<2x32xbf16>, vector<32x128xbf16>, vector<2x128xf32> -> vector<2x128xf32>
    %38 = arith.addf %35, %37 : vector<2x128xf32>
    %39 = arith.negf %38 : vector<2x128xf32>
    %40 = math.exp %39 : vector<2x128xf32>
    %cst_12 = arith.constant 1.000000e+00 : f32
    %41 = vector.broadcast %cst_12 : f32 to vector<2x128xf32>
    %42 = arith.addf %41, %40 : vector<2x128xf32>
    %43 = arith.divf %41, %42 : vector<2x128xf32>
    %44 = math.tanh %38 : vector<2x128xf32>
    %45 = vector.extract_strided_slice %43 {offsets = [0, 0], sizes = [2, 32], strides = [1, 1]} : vector<2x128xf32> to vector<2x32xf32>
    %46 = vector.extract_strided_slice %43 {offsets = [0, 32], sizes = [2, 32], strides = [1, 1]} : vector<2x128xf32> to vector<2x32xf32>
    %47 = vector.extract_strided_slice %44 {offsets = [0, 64], sizes = [2, 32], strides = [1, 1]} : vector<2x128xf32> to vector<2x32xf32>
    %48 = vector.extract_strided_slice %43 {offsets = [0, 96], sizes = [2, 32], strides = [1, 1]} : vector<2x128xf32> to vector<2x32xf32>
    %49 = arith.mulf %46, %31 : vector<2x32xf32>
    %50 = arith.mulf %45, %47 : vector<2x32xf32>
    %51 = arith.addf %49, %50 : vector<2x32xf32>
    %52 = math.tanh %51 : vector<2x32xf32>
    %53 = arith.mulf %48, %52 : vector<2x32xf32>
    %54 = vector.extract_strided_slice %9 {offsets = [2, 0, 0], sizes = [1, 2, 128], strides = [1, 1, 1]} : vector<8x2x128xf32> to vector<1x2x128xf32>
    %55 = vector.shape_cast %54 : vector<1x2x128xf32> to vector<2x128xf32>
    %56 = arith.truncf %53 : vector<2x32xf32> to vector<2x32xbf16>
    %cst_13 = arith.constant dense<0.000000e+00> : vector<2x128xf32>
    %57 = tpu.matmul %56, %11, %cst_13 {dimension_numbers = #tpu.dot_dimension_numbers<[1], [0], [0], [1], [0, 0, 1, 1], [], []>} : vector<2x32xbf16>, vector<32x128xbf16>, vector<2x128xf32> -> vector<2x128xf32>
    %58 = arith.addf %55, %57 : vector<2x128xf32>
    %59 = arith.negf %58 : vector<2x128xf32>
    %60 = math.exp %59 : vector<2x128xf32>
    %cst_14 = arith.constant 1.000000e+00 : f32
    %61 = vector.broadcast %cst_14 : f32 to vector<2x128xf32>
    %62 = arith.addf %61, %60 : vector<2x128xf32>
    %63 = arith.divf %61, %62 : vector<2x128xf32>
    %64 = math.tanh %58 : vector<2x128xf32>
    %65 = vector.extract_strided_slice %63 {offsets = [0, 0], sizes = [2, 32], strides = [1, 1]} : vector<2x128xf32> to vector<2x32xf32>
    %66 = vector.extract_strided_slice %63 {offsets = [0, 32], sizes = [2, 32], strides = [1, 1]} : vector<2x128xf32> to vector<2x32xf32>
    %67 = vector.extract_strided_slice %64 {offsets = [0, 64], sizes = [2, 32], strides = [1, 1]} : vector<2x128xf32> to vector<2x32xf32>
    %68 = vector.extract_strided_slice %63 {offsets = [0, 96], sizes = [2, 32], strides = [1, 1]} : vector<2x128xf32> to vector<2x32xf32>
    %69 = arith.mulf %66, %51 : vector<2x32xf32>
    %70 = arith.mulf %65, %67 : vector<2x32xf32>
    %71 = arith.addf %69, %70 : vector<2x32xf32>
    %72 = math.tanh %71 : vector<2x32xf32>
    %73 = arith.mulf %68, %72 : vector<2x32xf32>
    %74 = vector.extract_strided_slice %9 {offsets = [3, 0, 0], sizes = [1, 2, 128], strides = [1, 1, 1]} : vector<8x2x128xf32> to vector<1x2x128xf32>
    %75 = vector.shape_cast %74 : vector<1x2x128xf32> to vector<2x128xf32>
    %76 = arith.truncf %73 : vector<2x32xf32> to vector<2x32xbf16>
    %cst_15 = arith.constant dense<0.000000e+00> : vector<2x128xf32>
    %77 = tpu.matmul %76, %11, %cst_15 {dimension_numbers = #tpu.dot_dimension_numbers<[1], [0], [0], [1], [0, 0, 1, 1], [], []>} : vector<2x32xbf16>, vector<32x128xbf16>, vector<2x128xf32> -> vector<2x128xf32>
    %78 = arith.addf %75, %77 : vector<2x128xf32>
    %79 = arith.negf %78 : vector<2x128xf32>
    %80 = math.exp %79 : vector<2x128xf32>
    %cst_16 = arith.constant 1.000000e+00 : f32
    %81 = vector.broadcast %cst_16 : f32 to vector<2x128xf32>
    %82 = arith.addf %81, %80 : vector<2x128xf32>
    %83 = arith.divf %81, %82 : vector<2x128xf32>
    %84 = math.tanh %78 : vector<2x128xf32>
    %85 = vector.extract_strided_slice %83 {offsets = [0, 0], sizes = [2, 32], strides = [1, 1]} : vector<2x128xf32> to vector<2x32xf32>
    %86 = vector.extract_strided_slice %83 {offsets = [0, 32], sizes = [2, 32], strides = [1, 1]} : vector<2x128xf32> to vector<2x32xf32>
    %87 = vector.extract_strided_slice %84 {offsets = [0, 64], sizes = [2, 32], strides = [1, 1]} : vector<2x128xf32> to vector<2x32xf32>
    %88 = vector.extract_strided_slice %83 {offsets = [0, 96], sizes = [2, 32], strides = [1, 1]} : vector<2x128xf32> to vector<2x32xf32>
    %89 = arith.mulf %86, %71 : vector<2x32xf32>
    %90 = arith.mulf %85, %87 : vector<2x32xf32>
    %91 = arith.addf %89, %90 : vector<2x32xf32>
    %92 = math.tanh %91 : vector<2x32xf32>
    %93 = arith.mulf %88, %92 : vector<2x32xf32>
    %94 = vector.extract_strided_slice %9 {offsets = [4, 0, 0], sizes = [1, 2, 128], strides = [1, 1, 1]} : vector<8x2x128xf32> to vector<1x2x128xf32>
    %95 = vector.shape_cast %94 : vector<1x2x128xf32> to vector<2x128xf32>
    %96 = arith.truncf %93 : vector<2x32xf32> to vector<2x32xbf16>
    %cst_17 = arith.constant dense<0.000000e+00> : vector<2x128xf32>
    %97 = tpu.matmul %96, %11, %cst_17 {dimension_numbers = #tpu.dot_dimension_numbers<[1], [0], [0], [1], [0, 0, 1, 1], [], []>} : vector<2x32xbf16>, vector<32x128xbf16>, vector<2x128xf32> -> vector<2x128xf32>
    %98 = arith.addf %95, %97 : vector<2x128xf32>
    %99 = arith.negf %98 : vector<2x128xf32>
    %100 = math.exp %99 : vector<2x128xf32>
    %cst_18 = arith.constant 1.000000e+00 : f32
    %101 = vector.broadcast %cst_18 : f32 to vector<2x128xf32>
    %102 = arith.addf %101, %100 : vector<2x128xf32>
    %103 = arith.divf %101, %102 : vector<2x128xf32>
    %104 = math.tanh %98 : vector<2x128xf32>
    %105 = vector.extract_strided_slice %103 {offsets = [0, 0], sizes = [2, 32], strides = [1, 1]} : vector<2x128xf32> to vector<2x32xf32>
    %106 = vector.extract_strided_slice %103 {offsets = [0, 32], sizes = [2, 32], strides = [1, 1]} : vector<2x128xf32> to vector<2x32xf32>
    %107 = vector.extract_strided_slice %104 {offsets = [0, 64], sizes = [2, 32], strides = [1, 1]} : vector<2x128xf32> to vector<2x32xf32>
    %108 = vector.extract_strided_slice %103 {offsets = [0, 96], sizes = [2, 32], strides = [1, 1]} : vector<2x128xf32> to vector<2x32xf32>
    %109 = arith.mulf %106, %91 : vector<2x32xf32>
    %110 = arith.mulf %105, %107 : vector<2x32xf32>
    %111 = arith.addf %109, %110 : vector<2x32xf32>
    %112 = math.tanh %111 : vector<2x32xf32>
    %113 = arith.mulf %108, %112 : vector<2x32xf32>
    %114 = vector.extract_strided_slice %9 {offsets = [5, 0, 0], sizes = [1, 2, 128], strides = [1, 1, 1]} : vector<8x2x128xf32> to vector<1x2x128xf32>
    %115 = vector.shape_cast %114 : vector<1x2x128xf32> to vector<2x128xf32>
    %116 = arith.truncf %113 : vector<2x32xf32> to vector<2x32xbf16>
    %cst_19 = arith.constant dense<0.000000e+00> : vector<2x128xf32>
    %117 = tpu.matmul %116, %11, %cst_19 {dimension_numbers = #tpu.dot_dimension_numbers<[1], [0], [0], [1], [0, 0, 1, 1], [], []>} : vector<2x32xbf16>, vector<32x128xbf16>, vector<2x128xf32> -> vector<2x128xf32>
    %118 = arith.addf %115, %117 : vector<2x128xf32>
    %119 = arith.negf %118 : vector<2x128xf32>
    %120 = math.exp %119 : vector<2x128xf32>
    %cst_20 = arith.constant 1.000000e+00 : f32
    %121 = vector.broadcast %cst_20 : f32 to vector<2x128xf32>
    %122 = arith.addf %121, %120 : vector<2x128xf32>
    %123 = arith.divf %121, %122 : vector<2x128xf32>
    %124 = math.tanh %118 : vector<2x128xf32>
    %125 = vector.extract_strided_slice %123 {offsets = [0, 0], sizes = [2, 32], strides = [1, 1]} : vector<2x128xf32> to vector<2x32xf32>
    %126 = vector.extract_strided_slice %123 {offsets = [0, 32], sizes = [2, 32], strides = [1, 1]} : vector<2x128xf32> to vector<2x32xf32>
    %127 = vector.extract_strided_slice %124 {offsets = [0, 64], sizes = [2, 32], strides = [1, 1]} : vector<2x128xf32> to vector<2x32xf32>
    %128 = vector.extract_strided_slice %123 {offsets = [0, 96], sizes = [2, 32], strides = [1, 1]} : vector<2x128xf32> to vector<2x32xf32>
    %129 = arith.mulf %126, %111 : vector<2x32xf32>
    %130 = arith.mulf %125, %127 : vector<2x32xf32>
    %131 = arith.addf %129, %130 : vector<2x32xf32>
    %132 = math.tanh %131 : vector<2x32xf32>
    %133 = arith.mulf %128, %132 : vector<2x32xf32>
    %134 = vector.extract_strided_slice %9 {offsets = [6, 0, 0], sizes = [1, 2, 128], strides = [1, 1, 1]} : vector<8x2x128xf32> to vector<1x2x128xf32>
    %135 = vector.shape_cast %134 : vector<1x2x128xf32> to vector<2x128xf32>
    %136 = arith.truncf %133 : vector<2x32xf32> to vector<2x32xbf16>
    %cst_21 = arith.constant dense<0.000000e+00> : vector<2x128xf32>
    %137 = tpu.matmul %136, %11, %cst_21 {dimension_numbers = #tpu.dot_dimension_numbers<[1], [0], [0], [1], [0, 0, 1, 1], [], []>} : vector<2x32xbf16>, vector<32x128xbf16>, vector<2x128xf32> -> vector<2x128xf32>
    %138 = arith.addf %135, %137 : vector<2x128xf32>
    %139 = arith.negf %138 : vector<2x128xf32>
    %140 = math.exp %139 : vector<2x128xf32>
    %cst_22 = arith.constant 1.000000e+00 : f32
    %141 = vector.broadcast %cst_22 : f32 to vector<2x128xf32>
    %142 = arith.addf %141, %140 : vector<2x128xf32>
    %143 = arith.divf %141, %142 : vector<2x128xf32>
    %144 = math.tanh %138 : vector<2x128xf32>
    %145 = vector.extract_strided_slice %143 {offsets = [0, 0], sizes = [2, 32], strides = [1, 1]} : vector<2x128xf32> to vector<2x32xf32>
    %146 = vector.extract_strided_slice %143 {offsets = [0, 32], sizes = [2, 32], strides = [1, 1]} : vector<2x128xf32> to vector<2x32xf32>
    %147 = vector.extract_strided_slice %144 {offsets = [0, 64], sizes = [2, 32], strides = [1, 1]} : vector<2x128xf32> to vector<2x32xf32>
    %148 = vector.extract_strided_slice %143 {offsets = [0, 96], sizes = [2, 32], strides = [1, 1]} : vector<2x128xf32> to vector<2x32xf32>
    %149 = arith.mulf %146, %131 : vector<2x32xf32>
    %150 = arith.mulf %145, %147 : vector<2x32xf32>
    %151 = arith.addf %149, %150 : vector<2x32xf32>
    %152 = math.tanh %151 : vector<2x32xf32>
    %153 = arith.mulf %148, %152 : vector<2x32xf32>
    %154 = vector.extract_strided_slice %9 {offsets = [7, 0, 0], sizes = [1, 2, 128], strides = [1, 1, 1]} : vector<8x2x128xf32> to vector<1x2x128xf32>
    %155 = vector.shape_cast %154 : vector<1x2x128xf32> to vector<2x128xf32>
    %156 = arith.truncf %153 : vector<2x32xf32> to vector<2x32xbf16>
    %cst_23 = arith.constant dense<0.000000e+00> : vector<2x128xf32>
    %157 = tpu.matmul %156, %11, %cst_23 {dimension_numbers = #tpu.dot_dimension_numbers<[1], [0], [0], [1], [0, 0, 1, 1], [], []>} : vector<2x32xbf16>, vector<32x128xbf16>, vector<2x128xf32> -> vector<2x128xf32>
    %158 = arith.addf %155, %157 : vector<2x128xf32>
    %159 = arith.negf %158 : vector<2x128xf32>
    %160 = math.exp %159 : vector<2x128xf32>
    %cst_24 = arith.constant 1.000000e+00 : f32
    %161 = vector.broadcast %cst_24 : f32 to vector<2x128xf32>
    %162 = arith.addf %161, %160 : vector<2x128xf32>
    %163 = arith.divf %161, %162 : vector<2x128xf32>
    %164 = math.tanh %158 : vector<2x128xf32>
    %165 = vector.extract_strided_slice %163 {offsets = [0, 0], sizes = [2, 32], strides = [1, 1]} : vector<2x128xf32> to vector<2x32xf32>
    %166 = vector.extract_strided_slice %163 {offsets = [0, 32], sizes = [2, 32], strides = [1, 1]} : vector<2x128xf32> to vector<2x32xf32>
    %167 = vector.extract_strided_slice %164 {offsets = [0, 64], sizes = [2, 32], strides = [1, 1]} : vector<2x128xf32> to vector<2x32xf32>
    %168 = vector.extract_strided_slice %163 {offsets = [0, 96], sizes = [2, 32], strides = [1, 1]} : vector<2x128xf32> to vector<2x32xf32>
    %169 = arith.mulf %166, %151 : vector<2x32xf32>
    %170 = arith.mulf %165, %167 : vector<2x32xf32>
    %171 = arith.addf %169, %170 : vector<2x32xf32>
    %172 = math.tanh %171 : vector<2x32xf32>
    %173 = arith.mulf %168, %172 : vector<2x32xf32>
    %c0_25 = arith.constant 0 : index
    %c0_26 = arith.constant 0 : index
    %174 = vector.load %arg4[%c0_25, %c0_26] : memref<1x32xf32, #tpu.memory_space<vmem>>, vector<1x32xf32>
    %175 = vector.broadcast %174 : vector<1x32xf32> to vector<2x32xf32>
    %176 = arith.mulf %173, %175 : vector<2x32xf32>
    %cst_27 = arith.constant dense<0.000000e+00> : vector<2xf32>
    %177 = vector.multi_reduction <add>, %176, %cst_27 [1] : vector<2x32xf32> to vector<2xf32>
    %178 = vector.shape_cast %177 : vector<2xf32> to vector<2x1xf32>
    %c0_28 = arith.constant 0 : index
    %c0_29 = arith.constant 0 : index
    %179 = vector.load %arg5[%c0_28, %c0_29] : memref<1x1xf32, #tpu.memory_space<vmem>>, vector<1x1xf32>
    %180 = vector.broadcast %179 : vector<1x1xf32> to vector<2x1xf32>
    %181 = arith.addf %178, %180 : vector<2x1xf32>
    %c0_30 = arith.constant 0 : index
    %c0_31 = arith.constant 0 : index
    %182 = vector.load %arg6[%c0_30, %c0_31] : memref<2x1xf32, #tpu.memory_space<vmem>>, vector<2x1xf32>
    tpu.vector_store %arg6[%c0_30, %c0_31], %181 {strides = array<i32>} : memref<2x1xf32, #tpu.memory_space<vmem>>, vector<2x1xf32>,
    return
  }
}

</mosaic_0001>

<llo_original>
// kernel: tpu_custom_call.1
$region0: #{tpu_custom_call.1}
  #allocation0 [shape = 'u32[]', space=smem, size = 0x4, offset = 0x4, fixed_abs, tag = 'smem constant byte address 0x4 - core index']
  #allocation1 [shape = 'u32[144,128]{1,0:T(1,128)}', space=vmem, size = 0x12000, scoped, tag = 'internal scratch']
  #allocation2 [shape = 'f32[1,1]{1,0:T(1,128)S(1)}', space=vmem, size = 0x200, scoped, tag = 'scoped memory for tpu_custom_call.1']
  %s0 = inlined_call_operand.vmem [shape: f32[8,2,1], index: 0, kind: input, shape index: {}]
  %s1 = inlined_call_operand.vmem [shape: f32[1,128], index: 1, kind: input, shape index: {}]
  %s2 = inlined_call_operand.hbm [shape: f32[32,128], index: 2, kind: input, shape index: {}]
  %s3 = inlined_call_operand.vmem [shape: f32[1,128], index: 3, kind: input, shape index: {}]
  %s4 = inlined_call_operand.vmem [shape: f32[1,32], index: 4, kind: input, shape index: {}]
  %s5 = inlined_call_operand.<no memory space> [shape: f32[1,1], index: 5, kind: input, shape index: {}]
  %s6 = inlined_call_operand.vmem [shape: f32[2,1], index: 6, kind: output, shape index: {}]
  %s7 = sld [smem:[#allocation0]]
  $region38: #{tpu_custom_call.1} parent=0
    _
  %s9 = ssub.s32 1, %s7
  %s10 = scalar_select 0, %s9, %s7
  %v11 = vstv %s5
  %12 = vst [vmem:[#allocation2] sm:$0x1] %v11
  $region1: #{tpu_custom_call.1} parent=0
    #allocation3 [shape = 'u8[16384]{0}', space=vmem, size = 0x4000, scoped, tag = 'input window, operand 2, single buffered']
    #allocation4 [shape = 's32[1]{0}', space=sflag, size = 0x4, scoped, tag = 'scoped memory for tpu_custom_call.1']
    %13 = vsyncpa [#allocation4], 0
    // Predicated region
    $region2: #{tpu_custom_call.1} parent=1 // pred_check
      _
    $region3: #{tpu_custom_call.1} parent=1 // pred_check_branch
      %15 = sbr.rel (0) target = $region5
    $region4: #{tpu_custom_call.1} parent=1 // pred_region
      _
    $region5: #{tpu_custom_call.1} parent=1 // pred_fallthru
      _
    // Predicated region
    $region6: #{tpu_custom_call.1} parent=1 // pred_check
      _
    $region7: #{tpu_custom_call.1} parent=1 // pred_check_branch
      %17 = sbr.rel (0) target = $region9
    $region8: #{tpu_custom_call.1} parent=1 // pred_region
      _
    $region9: #{tpu_custom_call.1} parent=1 // pred_fallthru
      _
    // Predicated region
    $region10: #{tpu_custom_call.1} parent=1 // pred_check
      _
    $region11: #{tpu_custom_call.1} parent=1 // pred_check_branch
      %19 = sbr.rel (0) target = $region13
    $region12: #{tpu_custom_call.1} parent=1 // pred_region
      %s21 = ssub.s32 512, 512
      %22 = vsyncadd [#allocation4], %s21
      %s23 = sshll.u32 [#allocation3], 4
      %s24 = int_to_ptr.vmem [resolvable:$true] %s23
      %29 = dma.hbm_to_vmem [thread:$0]  %s2, 512, %s24, [#allocation4], 128, 128, 8
    $region13: #{tpu_custom_call.1} parent=1 // pred_fallthru
      _
    // Predicated region
    $region14: #{tpu_custom_call.1} parent=1 // pred_check
      _
    $region15: #{tpu_custom_call.1} parent=1 // pred_check_branch
      %31 = sbr.rel (0) target = $region17
    $region16: #{tpu_custom_call.1} parent=1 // pred_region
      _
    $region17: #{tpu_custom_call.1} parent=1 // pred_fallthru
      _
    // Predicated region
    $region18: #{tpu_custom_call.1} parent=1 // pred_check
      _
    $region19: #{tpu_custom_call.1} parent=1 // pred_check_branch
      %33 = sbr.rel (0) target = $region21
    $region20: #{tpu_custom_call.1} parent=1 // pred_region
      _
    $region21: #{tpu_custom_call.1} parent=1 // pred_fallthru
      _
    // Predicated region
    $region22: #{tpu_custom_call.1} parent=1 // pred_check
      _
    $region23: #{tpu_custom_call.1} parent=1 // pred_check_branch
      %35 = sbr.rel (0) target = $region25
    $region24: #{tpu_custom_call.1} parent=1 // pred_region
      _
    $region25: #{tpu_custom_call.1} parent=1 // pred_fallthru
      _
    // Predicated region
    $region26: #{tpu_custom_call.1} parent=1 // pred_check
      _
    $region27: #{tpu_custom_call.1} parent=1 // pred_check_branch
      %37 = sbr.rel (0) target = $region29
    $region28: #{tpu_custom_call.1} parent=1 // pred_region
      %38 = dma.done [#allocation4], 512
    $region29: #{tpu_custom_call.1} parent=1 // pred_fallthru
      _
    %v40 = vld [vmem:[%s1] sm:$0x1]
    %v41 = vld [vmem:[%s3] sm:$0x1]
    %v42 = vld [vmem:[%s0] sm:$0x3]
    %v43 = vld [vmem:[%s0 + $0x2] sm:$0x3]
    %v44 = vld [vmem:[%s0 + $0x4] sm:$0x3]
    %v45 = vld [vmem:[%s0 + $0x6] sm:$0x3]
    %v46 = vld [vmem:[%s0 + $0x8] sm:$0x3]
    %v47 = vld [vmem:[%s0 + $0xa] sm:$0x3]
    %v48 = vld [vmem:[%s0 + $0xc] sm:$0x3]
    %v49 = vld [vmem:[%s0 + $0xe] sm:$0x3]
    %51 = vset.pattern.permute.xlu0 0
    %52 = vperm.xlu0 %51, %v42
    %v53 = vpop.permute.xlu0 %52
    %56 = vset.pattern.permute.xlu0 0
    %57 = vperm.xlu0 %56, %v43
    %v58 = vpop.permute.xlu0 %57
    %61 = vset.pattern.permute.xlu0 0
    %62 = vperm.xlu0 %61, %v44
    %v63 = vpop.permute.xlu0 %62
    %66 = vset.pattern.permute.xlu0 0
    %67 = vperm.xlu0 %66, %v45
    %v68 = vpop.permute.xlu0 %67
    %71 = vset.pattern.permute.xlu0 0
    %72 = vperm.xlu0 %71, %v46
    %v73 = vpop.permute.xlu0 %72
    %76 = vset.pattern.permute.xlu0 0
    %77 = vperm.xlu0 %76, %v47
    %v78 = vpop.permute.xlu0 %77
    %81 = vset.pattern.permute.xlu0 0
    %82 = vperm.xlu0 %81, %v48
    %v83 = vpop.permute.xlu0 %82
    %86 = vset.pattern.permute.xlu0 0
    %87 = vperm.xlu0 %86, %v49
    %v88 = vpop.permute.xlu0 %87
    %v91 = vlaneseq
    %v92 = vshrl.u32 %v91, 7
    %v93 = vsub.s32 0, %v92
    %v94 = vrot.slane %v40, %v93
    %v96 = vmul.f32 %v53, %v94
    %v97 = vmul.f32 %v58, %v94
    %v98 = vmul.f32 %v63, %v94
    %v99 = vmul.f32 %v68, %v94
    %v100 = vmul.f32 %v73, %v94
    %v101 = vmul.f32 %v78, %v94
    %v102 = vmul.f32 %v83, %v94
    %v103 = vmul.f32 %v88, %v94
    %v105 = vlaneseq
    %v106 = vshrl.u32 %v105, 7
    %v107 = vsub.s32 0, %v106
    %v108 = vrot.slane %v41, %v107
    %v110 = vadd.f32 %v96, %v108
    %v111 = vadd.f32 %v97, %v108
    %v112 = vadd.f32 %v98, %v108
    %v113 = vadd.f32 %v99, %v108
    %v114 = vadd.f32 %v100, %v108
    %v115 = vadd.f32 %v101, %v108
    %v116 = vadd.f32 %v102, %v108
    %v117 = vadd.f32 %v103, %v108
    %v118 = vld [vmem:[#allocation3] sm:$0xff]
    %v119 = vld [vmem:[#allocation3 + $0x8] sm:$0xff]
    %v120 = vld [vmem:[#allocation3 + $0x10] sm:$0xff]
    %v121 = vld [vmem:[#allocation3 + $0x18] sm:$0xff]
    %v122 = vpack.c.bf16 %v119, %v118
    %v123 = vpack.c.bf16 %v121, %v120
    %vm124 = vcmask 261120
    %v126 = vsel %vm124, 0, 0
    %128 = vmatprep.subr.bf16.mxu0 0
    %129 = vmatpush1.bf16.msra.mxu0 %v122
    %130 = vmatprep.subr.bf16.mxu0 0
    %131 = vmatpush1.bf16.msra.mxu0 %v123
    %132 = vmatprep.subr.bf16.mxu0 0
    %133 = vmatpush1.bf16.msra.mxu0 0
    %134 = vmatprep.subr.bf16.mxu0 0
    %135 = vmatpush1.bf16.msra.mxu0 0
    %136 = vmatprep.subr.bf16.mxu0 0
    %137 = vmatpush1.bf16.msra.mxu0 0
    %138 = vmatprep.subr.bf16.mxu0 0
    %139 = vmatpush1.bf16.msra.mxu0 0
    %140 = vmatprep.subr.bf16.mxu0 0
    %141 = vmatpush1.bf16.msra.mxu0 0
    %142 = vmatprep.subr.bf16.mxu0 0
    %143 = vmatpush1.bf16.msra.mxu0 0
    %144 = vmatprep.subr.bf16.mxu0 0
    %145 = vmatpush1.bf16.msra.mxu0 0
    %146 = vmatprep.subr.bf16.mxu0 0
    %147 = vmatpush1.bf16.msra.mxu0 0
    %148 = vmatprep.subr.bf16.mxu0 0
    %149 = vmatpush1.bf16.msra.mxu0 0
    %150 = vmatprep.subr.bf16.mxu0 0
    %151 = vmatpush1.bf16.msra.mxu0 0
    %152 = vmatprep.subr.bf16.mxu0 0
    %153 = vmatpush1.bf16.msra.mxu0 0
    %154 = vmatprep.subr.bf16.mxu0 0
    %155 = vmatpush1.bf16.msra.mxu0 0
    %156 = vmatprep.subr.bf16.mxu0 0
    %157 = vmatpush1.bf16.msra.mxu0 0
    %158 = vmatprep.subr.bf16.mxu0 0
    %159 = vmatpush1.bf16.msra.mxu0 0
    %160 = vmatprep.mubr.bf16.mxu0 0
    %161 = vmatmul.mubr.bf16.gmra.mrb[0].mxu0 %v126
    %v162 = vpop.f32.mrb[0].mxu0
    %v163 = vadd.f32 0.0, %v162
    %v164 = vpop.f32.mrb[0].mxu0
    %v165 = vpop.f32.mrb[0].mxu0
    %v166 = vpop.f32.mrb[0].mxu0
    %167 = vdwg.mxu0
    %v168 = vadd.f32 %v110, %v163
    %v169 = vxor.u32 %v168, 2147483648
    %v170 = vmul.f32 %v169, 1.442695
    %v171 = vpow.pop %v170
    %v172 = vadd.f32 %v171, 1.0
    %v173 = vrcp.pop %v172
    %v174 = vmul.f32 1.0, %v173
    %v175 = vtanh.pop %v168
    %v176 = vmul.f32 %v174, 0.0
    %178 = vrot.lane.b32.xlu0 %v175, 64
    %v179 = vpop.permute.xlu0 %178
    %v181 = vmul.f32 %v174, %v179
    %183 = vrot.lane.b32.xlu0 %v181, 32
    %v184 = vpop.permute.xlu0 %183
    %v186 = vadd.f32 %v176, %v184
    %v187 = vtanh.pop %v186
    %189 = vrot.lane.b32.xlu0 %v187, 64
    %v190 = vpop.permute.xlu0 %189
    %v192 = vmul.f32 %v174, %v190
    %v193 = vpack.c.bf16 %v192, %v192
    %195 = vrot.lane.b32.xlu0 %v193, 32
    %v196 = vpop.permute.xlu0 %195
    %v198 = vsel %vm124, %v196, 0
    %200 = vmatprep.subr.bf16.mxu0 0
    %201 = vmatpush1.bf16.msra.mxu0 %v122
    %202 = vmatprep.subr.bf16.mxu0 0
    %203 = vmatpush1.bf16.msra.mxu0 %v123
    %204 = vmatprep.subr.bf16.mxu0 0
    %205 = vmatpush1.bf16.msra.mxu0 0
    %206 = vmatprep.subr.bf16.mxu0 0
    %207 = vmatpush1.bf16.msra.mxu0 0
    %208 = vmatprep.subr.bf16.mxu0 0
    %209 = vmatpush1.bf16.msra.mxu0 0
    %210 = vmatprep.subr.bf16.mxu0 0
    %211 = vmatpush1.bf16.msra.mxu0 0
    %212 = vmatprep.subr.bf16.mxu0 0
    %213 = vmatpush1.bf16.msra.mxu0 0
    %214 = vmatprep.subr.bf16.mxu0 0
    %215 = vmatpush1.bf16.msra.mxu0 0
    %216 = vmatprep.subr.bf16.mxu0 0
    %217 = vmatpush1.bf16.msra.mxu0 0
    %218 = vmatprep.subr.bf16.mxu0 0
    %219 = vmatpush1.bf16.msra.mxu0 0
    %220 = vmatprep.subr.bf16.mxu0 0
    %221 = vmatpush1.bf16.msra.mxu0 0
    %222 = vmatprep.subr.bf16.mxu0 0
    %223 = vmatpush1.bf16.msra.mxu0 0
    %224 = vmatprep.subr.bf16.mxu0 0
    %225 = vmatpush1.bf16.msra.mxu0 0
    %226 = vmatprep.subr.bf16.mxu0 0
    %227 = vmatpush1.bf16.msra.mxu0 0
    %228 = vmatprep.subr.bf16.mxu0 0
    %229 = vmatpush1.bf16.msra.mxu0 0
    %230 = vmatprep.subr.bf16.mxu0 0
    %231 = vmatpush1.bf16.msra.mxu0 0
    %232 = vmatprep.mubr.bf16.mxu0 0
    %233 = vmatmul.mubr.bf16.gmra.mrb[0].mxu0 %v198
    %v234 = vpop.f32.mrb[0].mxu0
    %v235 = vadd.f32 0.0, %v234
    %v236 = vpop.f32.mrb[0].mxu0
    %v237 = vpop.f32.mrb[0].mxu0
    %v238 = vpop.f32.mrb[0].mxu0
    %239 = vdwg.mxu0
    %v240 = vadd.f32 %v111, %v235
    %v241 = vxor.u32 %v240, 2147483648
    %v242 = vmul.f32 %v241, 1.442695
    %v243 = vpow.pop %v242
    %v244 = vadd.f32 %v243, 1.0
    %v245 = vrcp.pop %v244
    %v246 = vmul.f32 1.0, %v245
    %v247 = vtanh.pop %v240
    %v248 = vmul.f32 %v246, %v186
    %250 = vrot.lane.b32.xlu0 %v247, 64
    %v251 = vpop.permute.xlu0 %250
    %v253 = vmul.f32 %v246, %v251
    %255 = vrot.lane.b32.xlu0 %v253, 32
    %v256 = vpop.permute.xlu0 %255
    %v258 = vadd.f32 %v248, %v256
    %v259 = vtanh.pop %v258
    %261 = vrot.lane.b32.xlu0 %v259, 64
    %v262 = vpop.permute.xlu0 %261
    %v264 = vmul.f32 %v246, %v262
    %v265 = vpack.c.bf16 %v264, %v264
    %267 = vrot.lane.b32.xlu0 %v265, 32
    %v268 = vpop.permute.xlu0 %267
    %v270 = vsel %vm124, %v268, 0
    %272 = vmatprep.subr.bf16.mxu0 0
    %273 = vmatpush1.bf16.msra.mxu0 %v122
    %274 = vmatprep.subr.bf16.mxu0 0
    %275 = vmatpush1.bf16.msra.mxu0 %v123
    %276 = vmatprep.subr.bf16.mxu0 0
    %277 = vmatpush1.bf16.msra.mxu0 0
    %278 = vmatprep.subr.bf16.mxu0 0
    %279 = vmatpush1.bf16.msra.mxu0 0
    %280 = vmatprep.subr.bf16.mxu0 0
    %281 = vmatpush1.bf16.msra.mxu0 0
    %282 = vmatprep.subr.bf16.mxu0 0
    %283 = vmatpush1.bf16.msra.mxu0 0
    %284 = vmatprep.subr.bf16.mxu0 0
    %285 = vmatpush1.bf16.msra.mxu0 0
    %286 = vmatprep.subr.bf16.mxu0 0
    %287 = vmatpush1.bf16.msra.mxu0 0
    %288 = vmatprep.subr.bf16.mxu0 0
    %289 = vmatpush1.bf16.msra.mxu0 0
    %290 = vmatprep.subr.bf16.mxu0 0
    %291 = vmatpush1.bf16.msra.mxu0 0
    %292 = vmatprep.subr.bf16.mxu0 0
    %293 = vmatpush1.bf16.msra.mxu0 0
    %294 = vmatprep.subr.bf16.mxu0 0
    %295 = vmatpush1.bf16.msra.mxu0 0
    %296 = vmatprep.subr.bf16.mxu0 0
    %297 = vmatpush1.bf16.msra.mxu0 0
    %298 = vmatprep.subr.bf16.mxu0 0
    %299 = vmatpush1.bf16.msra.mxu0 0
    %300 = vmatprep.subr.bf16.mxu0 0
    %301 = vmatpush1.bf16.msra.mxu0 0
    %302 = vmatprep.subr.bf16.mxu0 0
    %303 = vmatpush1.bf16.msra.mxu0 0
    %304 = vmatprep.mubr.bf16.mxu0 0
    %305 = vmatmul.mubr.bf16.gmra.mrb[0].mxu0 %v270
    %v306 = vpop.f32.mrb[0].mxu0
    %v307 = vadd.f32 0.0, %v306
    %v308 = vpop.f32.mrb[0].mxu0
    %v309 = vpop.f32.mrb[0].mxu0
    %v310 = vpop.f32.mrb[0].mxu0
    %311 = vdwg.mxu0
    %v312 = vadd.f32 %v112, %v307
    %v313 = vxor.u32 %v312, 2147483648
    %v314 = vmul.f32 %v313, 1.442695
    %v315 = vpow.pop %v314
    %v316 = vadd.f32 %v315, 1.0
    %v317 = vrcp.pop %v316
    %v318 = vmul.f32 1.0, %v317
    %v319 = vtanh.pop %v312
    %v320 = vmul.f32 %v318, %v258
    %322 = vrot.lane.b32.xlu0 %v319, 64
    %v323 = vpop.permute.xlu0 %322
    %v325 = vmul.f32 %v318, %v323
    %327 = vrot.lane.b32.xlu0 %v325, 32
    %v328 = vpop.permute.xlu0 %327
    %v330 = vadd.f32 %v320, %v328
    %v331 = vtanh.pop %v330
    %333 = vrot.lane.b32.xlu0 %v331, 64
    %v334 = vpop.permute.xlu0 %333
    %v336 = vmul.f32 %v318, %v334
    %v337 = vpack.c.bf16 %v336, %v336
    %339 = vrot.lane.b32.xlu0 %v337, 32
    %v340 = vpop.permute.xlu0 %339
    %v342 = vsel %vm124, %v340, 0
    %344 = vmatprep.subr.bf16.mxu0 0
    %345 = vmatpush1.bf16.msra.mxu0 %v122
    %346 = vmatprep.subr.bf16.mxu0 0
    %347 = vmatpush1.bf16.msra.mxu0 %v123
    %348 = vmatprep.subr.bf16.mxu0 0
    %349 = vmatpush1.bf16.msra.mxu0 0
    %350 = vmatprep.subr.bf16.mxu0 0
    %351 = vmatpush1.bf16.msra.mxu0 0
    %352 = vmatprep.subr.bf16.mxu0 0
    %353 = vmatpush1.bf16.msra.mxu0 0
    %354 = vmatprep.subr.bf16.mxu0 0
    %355 = vmatpush1.bf16.msra.mxu0 0
    %356 = vmatprep.subr.bf16.mxu0 0
    %357 = vmatpush1.bf16.msra.mxu0 0
    %358 = vmatprep.subr.bf16.mxu0 0
    %359 = vmatpush1.bf16.msra.mxu0 0
    %360 = vmatprep.subr.bf16.mxu0 0
    %361 = vmatpush1.bf16.msra.mxu0 0
    %362 = vmatprep.subr.bf16.mxu0 0
    %363 = vmatpush1.bf16.msra.mxu0 0
    %364 = vmatprep.subr.bf16.mxu0 0
    %365 = vmatpush1.bf16.msra.mxu0 0
    %366 = vmatprep.subr.bf16.mxu0 0
    %367 = vmatpush1.bf16.msra.mxu0 0
    %368 = vmatprep.subr.bf16.mxu0 0
    %369 = vmatpush1.bf16.msra.mxu0 0
    %370 = vmatprep.subr.bf16.mxu0 0
    %371 = vmatpush1.bf16.msra.mxu0 0
    %372 = vmatprep.subr.bf16.mxu0 0
    %373 = vmatpush1.bf16.msra.mxu0 0
    %374 = vmatprep.subr.bf16.mxu0 0
    %375 = vmatpush1.bf16.msra.mxu0 0
    %376 = vmatprep.mubr.bf16.mxu0 0
    %377 = vmatmul.mubr.bf16.gmra.mrb[0].mxu0 %v342
    %v378 = vpop.f32.mrb[0].mxu0
    %v379 = vadd.f32 0.0, %v378
    %v380 = vpop.f32.mrb[0].mxu0
    %v381 = vpop.f32.mrb[0].mxu0
    %v382 = vpop.f32.mrb[0].mxu0
    %383 = vdwg.mxu0
    %v384 = vadd.f32 %v113, %v379
    %v385 = vxor.u32 %v384, 2147483648
    %v386 = vmul.f32 %v385, 1.442695
    %v387 = vpow.pop %v386
    %v388 = vadd.f32 %v387, 1.0
    %v389 = vrcp.pop %v388
    %v390 = vmul.f32 1.0, %v389
    %v391 = vtanh.pop %v384
    %v392 = vmul.f32 %v390, %v330
    %394 = vrot.lane.b32.xlu0 %v391, 64
    %v395 = vpop.permute.xlu0 %394
    %v397 = vmul.f32 %v390, %v395
    %399 = vrot.lane.b32.xlu0 %v397, 32
    %v400 = vpop.permute.xlu0 %399
    %v402 = vadd.f32 %v392, %v400
    %v403 = vtanh.pop %v402
    %405 = vrot.lane.b32.xlu0 %v403, 64
    %v406 = vpop.permute.xlu0 %405
    %v408 = vmul.f32 %v390, %v406
    %v409 = vpack.c.bf16 %v408, %v408
    %411 = vrot.lane.b32.xlu0 %v409, 32
    %v412 = vpop.permute.xlu0 %411
    %v414 = vsel %vm124, %v412, 0
    %416 = vmatprep.subr.bf16.mxu0 0
    %417 = vmatpush1.bf16.msra.mxu0 %v122
    %418 = vmatprep.subr.bf16.mxu0 0
    %419 = vmatpush1.bf16.msra.mxu0 %v123
    %420 = vmatprep.subr.bf16.mxu0 0
    %421 = vmatpush1.bf16.msra.mxu0 0
    %422 = vmatprep.subr.bf16.mxu0 0
    %423 = vmatpush1.bf16.msra.mxu0 0
    %424 = vmatprep.subr.bf16.mxu0 0
    %425 = vmatpush1.bf16.msra.mxu0 0
    %426 = vmatprep.subr.bf16.mxu0 0
    %427 = vmatpush1.bf16.msra.mxu0 0
    %428 = vmatprep.subr.bf16.mxu0 0
    %429 = vmatpush1.bf16.msra.mxu0 0
    %430 = vmatprep.subr.bf16.mxu0 0
    %431 = vmatpush1.bf16.msra.mxu0 0
    %432 = vmatprep.subr.bf16.mxu0 0
    %433 = vmatpush1.bf16.msra.mxu0 0
    %434 = vmatprep.subr.bf16.mxu0 0
    %435 = vmatpush1.bf16.msra.mxu0 0
    %436 = vmatprep.subr.bf16.mxu0 0
    %437 = vmatpush1.bf16.msra.mxu0 0
    %438 = vmatprep.subr.bf16.mxu0 0
    %439 = vmatpush1.bf16.msra.mxu0 0
    %440 = vmatprep.subr.bf16.mxu0 0
    %441 = vmatpush1.bf16.msra.mxu0 0
    %442 = vmatprep.subr.bf16.mxu0 0
    %443 = vmatpush1.bf16.msra.mxu0 0
    %444 = vmatprep.subr.bf16.mxu0 0
    %445 = vmatpush1.bf16.msra.mxu0 0
    %446 = vmatprep.subr.bf16.mxu0 0
    %447 = vmatpush1.bf16.msra.mxu0 0
    %448 = vmatprep.mubr.bf16.mxu0 0
    %449 = vmatmul.mubr.bf16.gmra.mrb[0].mxu0 %v414
    %v450 = vpop.f32.mrb[0].mxu0
    %v451 = vadd.f32 0.0, %v450
    %v452 = vpop.f32.mrb[0].mxu0
    %v453 = vpop.f32.mrb[0].mxu0
    %v454 = vpop.f32.mrb[0].mxu0
    %455 = vdwg.mxu0
    %v456 = vadd.f32 %v114, %v451
    %v457 = vxor.u32 %v456, 2147483648
    %v458 = vmul.f32 %v457, 1.442695
    %v459 = vpow.pop %v458
    %v460 = vadd.f32 %v459, 1.0
    %v461 = vrcp.pop %v460
    %v462 = vmul.f32 1.0, %v461
    %v463 = vtanh.pop %v456
    %v464 = vmul.f32 %v462, %v402
    %466 = vrot.lane.b32.xlu0 %v463, 64
    %v467 = vpop.permute.xlu0 %466
    %v469 = vmul.f32 %v462, %v467
    %471 = vrot.lane.b32.xlu0 %v469, 32
    %v472 = vpop.permute.xlu0 %471
    %v474 = vadd.f32 %v464, %v472
    %v475 = vtanh.pop %v474
    %477 = vrot.lane.b32.xlu0 %v475, 64
    %v478 = vpop.permute.xlu0 %477
    %v480 = vmul.f32 %v462, %v478
    %v481 = vpack.c.bf16 %v480, %v480
    %483 = vrot.lane.b32.xlu0 %v481, 32
    %v484 = vpop.permute.xlu0 %483
    %v486 = vsel %vm124, %v484, 0
    %488 = vmatprep.subr.bf16.mxu0 0
    %489 = vmatpush1.bf16.msra.mxu0 %v122
    %490 = vmatprep.subr.bf16.mxu0 0
    %491 = vmatpush1.bf16.msra.mxu0 %v123
    %492 = vmatprep.subr.bf16.mxu0 0
    %493 = vmatpush1.bf16.msra.mxu0 0
    %494 = vmatprep.subr.bf16.mxu0 0
    %495 = vmatpush1.bf16.msra.mxu0 0
    %496 = vmatprep.subr.bf16.mxu0 0
    %497 = vmatpush1.bf16.msra.mxu0 0
    %498 = vmatprep.subr.bf16.mxu0 0
    %499 = vmatpush1.bf16.msra.mxu0 0
    %500 = vmatprep.subr.bf16.mxu0 0
    %501 = vmatpush1.bf16.msra.mxu0 0
    %502 = vmatprep.subr.bf16.mxu0 0
    %503 = vmatpush1.bf16.msra.mxu0 0
    %504 = vmatprep.subr.bf16.mxu0 0
    %505 = vmatpush1.bf16.msra.mxu0 0
    %506 = vmatprep.subr.bf16.mxu0 0
    %507 = vmatpush1.bf16.msra.mxu0 0
    %508 = vmatprep.subr.bf16.mxu0 0
    %509 = vmatpush1.bf16.msra.mxu0 0
    %510 = vmatprep.subr.bf16.mxu0 0
    %511 = vmatpush1.bf16.msra.mxu0 0
    %512 = vmatprep.subr.bf16.mxu0 0
    %513 = vmatpush1.bf16.msra.mxu0 0
    %514 = vmatprep.subr.bf16.mxu0 0
    %515 = vmatpush1.bf16.msra.mxu0 0
    %516 = vmatprep.subr.bf16.mxu0 0
    %517 = vmatpush1.bf16.msra.mxu0 0
    %518 = vmatprep.subr.bf16.mxu0 0
    %519 = vmatpush1.bf16.msra.mxu0 0
    %520 = vmatprep.mubr.bf16.mxu0 0
    %521 = vmatmul.mubr.bf16.gmra.mrb[0].mxu0 %v486
    %v522 = vpop.f32.mrb[0].mxu0
    %v523 = vadd.f32 0.0, %v522
    %v524 = vpop.f32.mrb[0].mxu0
    %v525 = vpop.f32.mrb[0].mxu0
    %v526 = vpop.f32.mrb[0].mxu0
    %527 = vdwg.mxu0
    %v528 = vadd.f32 %v115, %v523
    %v529 = vxor.u32 %v528, 2147483648
    %v530 = vmul.f32 %v529, 1.442695
    %v531 = vpow.pop %v530
    %v532 = vadd.f32 %v531, 1.0
    %v533 = vrcp.pop %v532
    %v534 = vmul.f32 1.0, %v533
    %v535 = vtanh.pop %v528
    %v536 = vmul.f32 %v534, %v474
    %538 = vrot.lane.b32.xlu0 %v535, 64
    %v539 = vpop.permute.xlu0 %538
    %v541 = vmul.f32 %v534, %v539
    %543 = vrot.lane.b32.xlu0 %v541, 32
    %v544 = vpop.permute.xlu0 %543
    %v546 = vadd.f32 %v536, %v544
    %v547 = vtanh.pop %v546
    %549 = vrot.lane.b32.xlu0 %v547, 64
    %v550 = vpop.permute.xlu0 %549
    %v552 = vmul.f32 %v534, %v550
    %v553 = vpack.c.bf16 %v552, %v552
    %555 = vrot.lane.b32.xlu0 %v553, 32
    %v556 = vpop.permute.xlu0 %555
    %v558 = vsel %vm124, %v556, 0
    %560 = vmatprep.subr.bf16.mxu0 0
    %561 = vmatpush1.bf16.msra.mxu0 %v122
    %562 = vmatprep.subr.bf16.mxu0 0
    %563 = vmatpush1.bf16.msra.mxu0 %v123
    %564 = vmatprep.subr.bf16.mxu0 0
    %565 = vmatpush1.bf16.msra.mxu0 0
    %566 = vmatprep.subr.bf16.mxu0 0
    %567 = vmatpush1.bf16.msra.mxu0 0
    %568 = vmatprep.subr.bf16.mxu0 0
    %569 = vmatpush1.bf16.msra.mxu0 0
    %570 = vmatprep.subr.bf16.mxu0 0
    %571 = vmatpush1.bf16.msra.mxu0 0
    %572 = vmatprep.subr.bf16.mxu0 0
    %573 = vmatpush1.bf16.msra.mxu0 0
    %574 = vmatprep.subr.bf16.mxu0 0
    %575 = vmatpush1.bf16.msra.mxu0 0
    %576 = vmatprep.subr.bf16.mxu0 0
    %577 = vmatpush1.bf16.msra.mxu0 0
    %578 = vmatprep.subr.bf16.mxu0 0
    %579 = vmatpush1.bf16.msra.mxu0 0
    %580 = vmatprep.subr.bf16.mxu0 0
    %581 = vmatpush1.bf16.msra.mxu0 0
    %582 = vmatprep.subr.bf16.mxu0 0
    %583 = vmatpush1.bf16.msra.mxu0 0
    %584 = vmatprep.subr.bf16.mxu0 0
    %585 = vmatpush1.bf16.msra.mxu0 0
    %586 = vmatprep.subr.bf16.mxu0 0
    %587 = vmatpush1.bf16.msra.mxu0 0
    %588 = vmatprep.subr.bf16.mxu0 0
    %589 = vmatpush1.bf16.msra.mxu0 0
    %590 = vmatprep.subr.bf16.mxu0 0
    %591 = vmatpush1.bf16.msra.mxu0 0
    %592 = vmatprep.mubr.bf16.mxu0 0
    %593 = vmatmul.mubr.bf16.gmra.mrb[0].mxu0 %v558
    %v594 = vpop.f32.mrb[0].mxu0
    %v595 = vadd.f32 0.0, %v594
    %v596 = vpop.f32.mrb[0].mxu0
    %v597 = vpop.f32.mrb[0].mxu0
    %v598 = vpop.f32.mrb[0].mxu0
    %599 = vdwg.mxu0
    %v600 = vadd.f32 %v116, %v595
    %v601 = vxor.u32 %v600, 2147483648
    %v602 = vmul.f32 %v601, 1.442695
    %v603 = vpow.pop %v602
    %v604 = vadd.f32 %v603, 1.0
    %v605 = vrcp.pop %v604
    %v606 = vmul.f32 1.0, %v605
    %v607 = vtanh.pop %v600
    %v608 = vmul.f32 %v606, %v546
    %610 = vrot.lane.b32.xlu0 %v607, 64
    %v611 = vpop.permute.xlu0 %610
    %v613 = vmul.f32 %v606, %v611
    %615 = vrot.lane.b32.xlu0 %v613, 32
    %v616 = vpop.permute.xlu0 %615
    %v618 = vadd.f32 %v608, %v616
    %v619 = vtanh.pop %v618
    %621 = vrot.lane.b32.xlu0 %v619, 64
    %v622 = vpop.permute.xlu0 %621
    %v624 = vmul.f32 %v606, %v622
    %v625 = vpack.c.bf16 %v624, %v624
    %627 = vrot.lane.b32.xlu0 %v625, 32
    %v628 = vpop.permute.xlu0 %627
    %v630 = vsel %vm124, %v628, 0
    %632 = vmatprep.subr.bf16.mxu0 0
    %633 = vmatpush1.bf16.msra.mxu0 %v122
    %634 = vmatprep.subr.bf16.mxu0 0
    %635 = vmatpush1.bf16.msra.mxu0 %v123
    %636 = vmatprep.subr.bf16.mxu0 0
    %637 = vmatpush1.bf16.msra.mxu0 0
    %638 = vmatprep.subr.bf16.mxu0 0
    %639 = vmatpush1.bf16.msra.mxu0 0
    %640 = vmatprep.subr.bf16.mxu0 0
    %641 = vmatpush1.bf16.msra.mxu0 0
    %642 = vmatprep.subr.bf16.mxu0 0
    %643 = vmatpush1.bf16.msra.mxu0 0
    %644 = vmatprep.subr.bf16.mxu0 0
    %645 = vmatpush1.bf16.msra.mxu0 0
    %646 = vmatprep.subr.bf16.mxu0 0
    %647 = vmatpush1.bf16.msra.mxu0 0
    %648 = vmatprep.subr.bf16.mxu0 0
    %649 = vmatpush1.bf16.msra.mxu0 0
    %650 = vmatprep.subr.bf16.mxu0 0
    %651 = vmatpush1.bf16.msra.mxu0 0
    %652 = vmatprep.subr.bf16.mxu0 0
    %653 = vmatpush1.bf16.msra.mxu0 0
    %654 = vmatprep.subr.bf16.mxu0 0
    %655 = vmatpush1.bf16.msra.mxu0 0
    %656 = vmatprep.subr.bf16.mxu0 0
    %657 = vmatpush1.bf16.msra.mxu0 0
    %658 = vmatprep.subr.bf16.mxu0 0
    %659 = vmatpush1.bf16.msra.mxu0 0
    %660 = vmatprep.subr.bf16.mxu0 0
    %661 = vmatpush1.bf16.msra.mxu0 0
    %662 = vmatprep.subr.bf16.mxu0 0
    %663 = vmatpush1.bf16.msra.mxu0 0
    %664 = vmatprep.mubr.bf16.mxu0 0
    %665 = vmatmul.mubr.bf16.gmra.mrb[0].mxu0 %v630
    %v666 = vpop.f32.mrb[0].mxu0
    %v667 = vadd.f32 0.0, %v666
    %v668 = vpop.f32.mrb[0].mxu0
    %v669 = vpop.f32.mrb[0].mxu0
    %v670 = vpop.f32.mrb[0].mxu0
    %671 = vdwg.mxu0
    %v672 = vadd.f32 %v117, %v667
    %v673 = vxor.u32 %v672, 2147483648
    %v674 = vmul.f32 %v673, 1.442695
    %v675 = vpow.pop %v674
    %v676 = vadd.f32 %v675, 1.0
    %v677 = vrcp.pop %v676
    %v678 = vmul.f32 1.0, %v677
    %v679 = vtanh.pop %v672
    %v680 = vmul.f32 %v678, %v618
    %682 = vrot.lane.b32.xlu0 %v679, 64
    %v683 = vpop.permute.xlu0 %682
    %v685 = vmul.f32 %v678, %v683
    %687 = vrot.lane.b32.xlu0 %v685, 32
    %v688 = vpop.permute.xlu0 %687
    %v690 = vadd.f32 %v680, %v688
    %v691 = vtanh.pop %v690
    %693 = vrot.lane.b32.xlu0 %v691, 64
    %v694 = vpop.permute.xlu0 %693
    %v696 = vmul.f32 %v678, %v694
    %v697 = vld [vmem:[%s4] sm:$0x1]
    %v699 = vlaneseq
    %v700 = vshrl.u32 %v699, 7
    %v701 = vsub.s32 0, %v700
    %v702 = vrot.slane %v697, %v701
    %703 = vrot.lane.b32.xlu0 %v702, 96
    %v704 = vpop.permute.xlu0 %703
    %v706 = vmul.f32 %v696, %v704
    %708 = vrot.lane.b32.xlu0 %v706, 32
    %v709 = vpop.permute.xlu0 %708
    %vm711 = vcmask 254976
    %v712 = vsel %vm711, %v709, 0.0
    %713 = vadd.xlane.f32.xlu0 %v712
    %v714 = vpop.xlane.xlu0 %713
    %v715 = vld [vmem:[#allocation2] sm:$0x1]
    %v717 = vlaneseq
    %v718 = vshrl.u32 %v717, 7
    %v719 = vsub.s32 0, %v718
    %v720 = vrot.slane %v715, %v719
    %v722 = vadd.f32 %v714, %v720
    %vm723 = vcmask 1024
    %724 = vst.msk [vmem:[%s6] sm:$0x3] %vm723, %v722
    // Predicated region
    $region30: #{tpu_custom_call.1} parent=1 // pred_check
      _
    $region31: #{tpu_custom_call.1} parent=1 // pred_check_branch
      %726 = sbr.rel (0) target = $region33
    $region32: #{tpu_custom_call.1} parent=1 // pred_region
      _
    $region33: #{tpu_custom_call.1} parent=1 // pred_fallthru
      _
    // Predicated region
    $region34: #{tpu_custom_call.1} parent=1 // pred_check
      _
    $region35: #{tpu_custom_call.1} parent=1 // pred_check_branch
      %728 = sbr.rel (0) target = $region37
    $region36: #{tpu_custom_call.1} parent=1 // pred_region
      _
    $region37: #{tpu_custom_call.1} parent=1 // pred_fallthru
      _
    %729 = vsyncpa [#allocation4], 1

</llo_original>
